<compile_context>
chip_gen: v5e
topology: v5e:2x2
jax: 0.10.0
libtpu: 0.0.40
codegen_flags: <defaults>
</compile_context>

<pallas_src>
import functools

import jax
import jax.numpy as jnp
from jax.experimental import pallas as pl
from jax.experimental.pallas import tpu as pltpu

LN_EPS = 1e-5        # nn.LayerNorm default
IN_DIM = 100
HID_DIM = 50
OUT_DIM = 10
TILE_B_DEFAULT = 2048  # ~2 MiB VMEM footprint (incl. double-buffering); fits all gens


def _round_up(n, m):
    return ((n + m - 1) // m) * m


def _net_kernel(x_ref, w1_ref, b1_ref, g_ref, beta_ref, w2_ref, b2_ref, o_ref):
    # Hoist all loads once (JAX does not CSE broadcast_in_dim).
    x = x_ref[...].astype(jnp.bfloat16)   # [TB, 100] (cast in-register for MXU)
    w1 = w1_ref[...]                      # bf16 [100, 50]
    b1 = b1_ref[...]                      # f32  [1, 50]
    g = g_ref[...]                        # f32  [1, 50]
    beta = beta_ref[...]                  # f32  [1, 50]
    w2 = w2_ref[...]                      # bf16 [50, 10]
    b2 = b2_ref[...]                      # f32  [1, 10]

    # fc1 on the MXU, f32 accumulation.
    h = jnp.dot(x, w1, preferred_element_type=jnp.float32) + b1

    # LayerNorm over last dim (biased variance, PyTorch semantics), all f32.
    mean = jnp.mean(h, axis=-1, keepdims=True)
    centered = h - mean
    var = jnp.mean(centered * centered, axis=-1, keepdims=True)
    inv_std = jax.lax.rsqrt(var + LN_EPS)          # EUP
    h = centered * inv_std * g + beta

    # ReLU.
    h = jnp.maximum(h, 0.0)

    # fc2 on the MXU (bf16 inputs, f32 accumulation); narrow [TB, 10] store.
    out = jnp.dot(h.astype(jnp.bfloat16), w2, preferred_element_type=jnp.float32) + b2
    o_ref[...] = out.astype(o_ref.dtype)


def net_with_layernorm(x, params, *, tile_b=TILE_B_DEFAULT):
    """x: [B, 100] float32. params: dict of pre-transposed weights/biases (f32)."""
    B = x.shape[0]

    # Batch tile: multiple of 8 sublanes, capped by requested size.
    tb = min(tile_b, _round_up(B, 8))
    n_tiles = pl.cdiv(B, tb)   # partial last block handled by Pallas (no pad copy)

    # Tiny, VMEM-resident weights; bf16 for the MXU fast path.
    w1 = params["w1"].astype(jnp.bfloat16)     # [100, 50]
    b1 = params["b1"]                          # [1, 50] f32
    gamma = params["gamma"]                    # [1, 50] f32
    beta = params["beta"]                      # [1, 50] f32
    w2 = params["w2"].astype(jnp.bfloat16)     # [50, 10]
    b2 = params["b2"]                          # [1, 10] f32

    resident = lambda shape: pl.BlockSpec(shape, lambda i: (0, 0))

    cost = pl.CostEstimate(
        flops=2 * B * (IN_DIM * HID_DIM + HID_DIM * OUT_DIM),
        bytes_accessed=(B * IN_DIM * 4 + B * OUT_DIM * 4
                        + (IN_DIM * HID_DIM + HID_DIM * OUT_DIM) * 2
                        + (3 * HID_DIM + OUT_DIM) * 4),
        transcendentals=B,  # one rsqrt per row
    )

    return pl.pallas_call(
        _net_kernel,
        out_shape=jax.ShapeDtypeStruct((B, OUT_DIM), jnp.float32),
        grid=(n_tiles,),
        in_specs=[
            pl.BlockSpec((tb, IN_DIM), lambda i: (i, 0)),   # x: streamed per tile
            resident((IN_DIM, HID_DIM)),                    # w1
            resident((1, HID_DIM)),                         # b1
            resident((1, HID_DIM)),                         # gamma
            resident((1, HID_DIM)),                         # beta
            resident((HID_DIM, OUT_DIM)),                   # w2
            resident((1, OUT_DIM)),                         # b2
        ],
        out_specs=pl.BlockSpec((tb, OUT_DIM), lambda i: (i, 0)),
        compiler_params=pltpu.CompilerParams(
            dimension_semantics=("parallel",),
        ),
        cost_estimate=cost,
    )(x, w1, b1, gamma, beta, w2, b2)


def init_params(key):
    """Deterministic init mirroring nn.Linear default (U[-1/sqrt(fan_in), ...])."""
    k1, k2, k3, k4 = jax.random.split(key, 4)
    bound1 = 1.0 / jnp.sqrt(float(IN_DIM))
    bound2 = 1.0 / jnp.sqrt(float(HID_DIM))
    return {
        # stored already transposed: [in, out]
        "w1": jax.random.uniform(k1, (IN_DIM, HID_DIM), jnp.float32, -bound1, bound1),
        "b1": jax.random.uniform(k2, (1, HID_DIM), jnp.float32, -bound1, bound1),
        "gamma": jnp.ones((1, HID_DIM), jnp.float32),   # LayerNorm weight init
        "beta": jnp.zeros((1, HID_DIM), jnp.float32),   # LayerNorm bias init
        "w2": jax.random.uniform(k3, (HID_DIM, OUT_DIM), jnp.float32, -bound2, bound2),
        "b2": jax.random.uniform(k4, (1, OUT_DIM), jnp.float32, -bound2, bound2),
    }


def _reference(x, p):
    """Pure-JAX f32 reference of the PyTorch forward."""
    h = x @ p["w1"] + p["b1"]
    mean = h.mean(-1, keepdims=True)
    var = ((h - mean) ** 2).mean(-1, keepdims=True)
    h = (h - mean) / jnp.sqrt(var + LN_EPS) * p["gamma"] + p["beta"]
    h = jnp.maximum(h, 0.0)
    return h @ p["w2"] + p["b2"]


if __name__ == "__main__":
    key = jax.random.PRNGKey(0)
    kx, kp = jax.random.split(key)
    B = 8
    x = jax.random.normal(kx, (B, IN_DIM), jnp.float32)
    params = init_params(kp)

    run = jax.jit(functools.partial(net_with_layernorm, tile_b=TILE_B_DEFAULT))
    out = jax.block_until_ready(run(x, params))

    ref = _reference(x, params)
    assert out.shape == (B, OUT_DIM)
    # bf16 matmul inputs with f32 accumulation -> slightly looser tolerance.
    assert jnp.allclose(out, ref, atol=2e-2, rtol=2e-2), (
        f"max abs err {jnp.max(jnp.abs(out - ref))}")
    print("KERNEL_OK")
</pallas_src>

<mosaic_0001>
module attributes {stable_mosaic.version = 11 : i64} {
  func.func @_net_kernel(%arg0: i32, %arg1: memref<8x100xf32, #tpu.memory_space<vmem>>, %arg2: memref<100x50xbf16, #tpu.memory_space<vmem>>, %arg3: memref<1x50xf32, #tpu.memory_space<vmem>>, %arg4: memref<1x50xf32, #tpu.memory_space<vmem>>, %arg5: memref<1x50xf32, #tpu.memory_space<vmem>>, %arg6: memref<50x10xbf16, #tpu.memory_space<vmem>>, %arg7: memref<1x10xf32, #tpu.memory_space<vmem>>, %arg8: memref<8x10xf32, #tpu.memory_space<vmem>>) attributes {dimension_semantics = [#tpu.dimension_semantics<parallel>], iteration_bounds = array<i64: 1>, scalar_prefetch = 0 : i64, scratch_operands = 0 : i64, tpu.core_type = #tpu.core_type<tc>, window_params = [{transform_indices = @transform_0, window_bounds = array<i64: 8, 100>}, {pipeline_mode = #tpu.pipeline_mode<synchronous>, transform_indices = @transform_1, window_bounds = array<i64: 100, 50>}, {pipeline_mode = #tpu.pipeline_mode<synchronous>, transform_indices = @transform_2, window_bounds = array<i64: 1, 50>}, {pipeline_mode = #tpu.pipeline_mode<synchronous>, transform_indices = @transform_3, window_bounds = array<i64: 1, 50>}, {pipeline_mode = #tpu.pipeline_mode<synchronous>, transform_indices = @transform_4, window_bounds = array<i64: 1, 50>}, {pipeline_mode = #tpu.pipeline_mode<synchronous>, transform_indices = @transform_5, window_bounds = array<i64: 50, 10>}, {pipeline_mode = #tpu.pipeline_mode<synchronous>, transform_indices = @transform_6, window_bounds = array<i64: 1, 10>}, {transform_indices = @transform_7, window_bounds = array<i64: 8, 10>}]} {
    %c0 = arith.constant 0 : index
    %c0_0 = arith.constant 0 : index
    %0 = vector.load %arg1[%c0, %c0_0] : memref<8x100xf32, #tpu.memory_space<vmem>>, vector<8x100xf32>
    %1 = arith.truncf %0 : vector<8x100xf32> to vector<8x100xbf16>
    %c0_1 = arith.constant 0 : index
    %c0_2 = arith.constant 0 : index
    %2 = vector.load %arg2[%c0_1, %c0_2] : memref<100x50xbf16, #tpu.memory_space<vmem>>, vector<100x50xbf16>
    %c0_3 = arith.constant 0 : index
    %c0_4 = arith.constant 0 : index
    %3 = vector.load %arg3[%c0_3, %c0_4] : memref<1x50xf32, #tpu.memory_space<vmem>>, vector<1x50xf32>
    %c0_5 = arith.constant 0 : index
    %c0_6 = arith.constant 0 : index
    %4 = vector.load %arg4[%c0_5, %c0_6] : memref<1x50xf32, #tpu.memory_space<vmem>>, vector<1x50xf32>
    %c0_7 = arith.constant 0 : index
    %c0_8 = arith.constant 0 : index
    %5 = vector.load %arg5[%c0_7, %c0_8] : memref<1x50xf32, #tpu.memory_space<vmem>>, vector<1x50xf32>
    %c0_9 = arith.constant 0 : index
    %c0_10 = arith.constant 0 : index
    %6 = vector.load %arg6[%c0_9, %c0_10] : memref<50x10xbf16, #tpu.memory_space<vmem>>, vector<50x10xbf16>
    %c0_11 = arith.constant 0 : index
    %c0_12 = arith.constant 0 : index
    %7 = vector.load %arg7[%c0_11, %c0_12] : memref<1x10xf32, #tpu.memory_space<vmem>>, vector<1x10xf32>
    %cst = arith.constant dense<0.000000e+00> : vector<8x50xf32>
    %8 = tpu.matmul %1, %2, %cst {dimension_numbers = #tpu.dot_dimension_numbers<[1], [0], [0], [1], [0, 0, 1, 1], [], []>} : vector<8x100xbf16>, vector<100x50xbf16>, vector<8x50xf32> -> vector<8x50xf32>
    %9 = vector.broadcast %3 : vector<1x50xf32> to vector<8x50xf32>
    %10 = arith.addf %8, %9 : vector<8x50xf32>
    %cst_13 = arith.constant dense<0.000000e+00> : vector<8xf32>
    %11 = vector.multi_reduction <add>, %10, %cst_13 [1] : vector<8x50xf32> to vector<8xf32>
    %12 = vector.shape_cast %11 : vector<8xf32> to vector<8x1xf32>
    %cst_14 = arith.constant 5.000000e+01 : f32
    %13 = vector.broadcast %cst_14 : f32 to vector<8x1xf32>
    %14 = arith.divf %12, %13 : vector<8x1xf32>
    %15 = vector.broadcast %14 : vector<8x1xf32> to vector<8x50xf32>
    %16 = arith.subf %10, %15 : vector<8x50xf32>
    %17 = arith.mulf %16, %16 : vector<8x50xf32>
    %cst_15 = arith.constant dense<0.000000e+00> : vector<8xf32>
    %18 = vector.multi_reduction <add>, %17, %cst_15 [1] : vector<8x50xf32> to vector<8xf32>
    %19 = vector.shape_cast %18 : vector<8xf32> to vector<8x1xf32>
    %cst_16 = arith.constant 5.000000e+01 : f32
    %20 = vector.broadcast %cst_16 : f32 to vector<8x1xf32>
    %21 = arith.divf %19, %20 : vector<8x1xf32>
    %cst_17 = arith.constant 9.99999974E-6 : f32
    %22 = vector.broadcast %cst_17 : f32 to vector<8x1xf32>
    %23 = arith.addf %21, %22 : vector<8x1xf32>
    %24 = math.rsqrt %23 : vector<8x1xf32>
    %25 = vector.broadcast %24 : vector<8x1xf32> to vector<8x50xf32>
    %26 = arith.mulf %16, %25 : vector<8x50xf32>
    %27 = vector.broadcast %4 : vector<1x50xf32> to vector<8x50xf32>
    %28 = arith.mulf %26, %27 : vector<8x50xf32>
    %29 = vector.broadcast %5 : vector<1x50xf32> to vector<8x50xf32>
    %30 = arith.addf %28, %29 : vector<8x50xf32>
    %cst_18 = arith.constant 0.000000e+00 : f32
    %31 = vector.broadcast %cst_18 : f32 to vector<8x50xf32>
    %32 = arith.maximumf %30, %31 : vector<8x50xf32>
    %33 = arith.truncf %32 : vector<8x50xf32> to vector<8x50xbf16>
    %cst_19 = arith.constant dense<0.000000e+00> : vector<8x10xf32>
    %34 = tpu.matmul %33, %6, %cst_19 {dimension_numbers = #tpu.dot_dimension_numbers<[1], [0], [0], [1], [0, 0, 1, 1], [], []>} : vector<8x50xbf16>, vector<50x10xbf16>, vector<8x10xf32> -> vector<8x10xf32>
    %35 = vector.broadcast %7 : vector<1x10xf32> to vector<8x10xf32>
    %36 = arith.addf %34, %35 : vector<8x10xf32>
    %c0_20 = arith.constant 0 : index
    %c0_21 = arith.constant 0 : index
    %37 = vector.load %arg8[%c0_20, %c0_21] : memref<8x10xf32, #tpu.memory_space<vmem>>, vector<8x10xf32>
    tpu.vector_store %arg8[%c0_20, %c0_21], %36 {strides = array<i32>} : memref<8x10xf32, #tpu.memory_space<vmem>>, vector<8x10xf32>,
    return
  }
  func.func @transform_0(%arg0: i32) -> (i32, i32) {
    %c0_i32 = arith.constant 0 : i32
    %c0_i32_0 = arith.constant 0 : i32
    return %arg0, %c0_i32 : i32, i32
  }
  func.func @transform_1(%arg0: i32) -> (i32, i32) {
    %c0_i32 = arith.constant 0 : i32
    %c0_i32_0 = arith.constant 0 : i32
    %c0_i32_1 = arith.constant 0 : i32
    return %c0_i32, %c0_i32_0 : i32, i32
  }
  func.func @transform_2(%arg0: i32) -> (i32, i32) {
    %c0_i32 = arith.constant 0 : i32
    %c0_i32_0 = arith.constant 0 : i32
    %c0_i32_1 = arith.constant 0 : i32
    return %c0_i32, %c0_i32_0 : i32, i32
  }
  func.func @transform_3(%arg0: i32) -> (i32, i32) {
    %c0_i32 = arith.constant 0 : i32
    %c0_i32_0 = arith.constant 0 : i32
    %c0_i32_1 = arith.constant 0 : i32
    return %c0_i32, %c0_i32_0 : i32, i32
  }
  func.func @transform_4(%arg0: i32) -> (i32, i32) {
    %c0_i32 = arith.constant 0 : i32
    %c0_i32_0 = arith.constant 0 : i32
    %c0_i32_1 = arith.constant 0 : i32
    return %c0_i32, %c0_i32_0 : i32, i32
  }
  func.func @transform_5(%arg0: i32) -> (i32, i32) {
    %c0_i32 = arith.constant 0 : i32
    %c0_i32_0 = arith.constant 0 : i32
    %c0_i32_1 = arith.constant 0 : i32
    return %c0_i32, %c0_i32_0 : i32, i32
  }
  func.func @transform_6(%arg0: i32) -> (i32, i32) {
    %c0_i32 = arith.constant 0 : i32
    %c0_i32_0 = arith.constant 0 : i32
    %c0_i32_1 = arith.constant 0 : i32
    return %c0_i32, %c0_i32_0 : i32, i32
  }
  func.func @transform_7(%arg0: i32) -> (i32, i32) {
    %c0_i32 = arith.constant 0 : i32
    %c0_i32_0 = arith.constant 0 : i32
    return %arg0, %c0_i32 : i32, i32
  }
}

</mosaic_0001>

<llo_original>
// kernel: net_with_layernorm.1
$region0: #{net_with_layernorm.1}
  #allocation0 [shape = 'u32[]', space=smem, size = 0x4, offset = 0x4, fixed_abs, tag = 'smem constant byte address 0x4 - core index']
  #allocation1 [shape = 'u32[72,128]{1,0:T(1,128)}', space=vmem, size = 0x9000, scoped, tag = 'internal scratch']
  %s0 = inlined_call_operand.vmem [shape: f32[8,100], index: 0, kind: input, shape index: {}]
  %s1 = inlined_call_operand.vmem [shape: bf16[100,50], index: 1, kind: input, shape index: {}]
  %s2 = inlined_call_operand.vmem [shape: f32[1,50], index: 2, kind: input, shape index: {}]
  %s3 = inlined_call_operand.vmem [shape: f32[1,50], index: 3, kind: input, shape index: {}]
  %s4 = inlined_call_operand.vmem [shape: f32[1,50], index: 4, kind: input, shape index: {}]
  %s5 = inlined_call_operand.vmem [shape: bf16[50,10], index: 5, kind: input, shape index: {}]
  %s6 = inlined_call_operand.vmem [shape: f32[1,10], index: 6, kind: input, shape index: {}]
  %s7 = inlined_call_operand.hbm [shape: f32[8,10], index: 7, kind: output, shape index: {}]
  %s8 = sld [smem:[#allocation0]]
  $region38: #{net_with_layernorm.1} parent=0
    _
  %s10 = ssub.s32 1, %s8
  %s11 = scalar_select 0, %s10, %s8
  $region1: #{net_with_layernorm.1} parent=0
    #allocation2 [shape = 'u8[4096]{0}', space=vmem, size = 0x1000, scoped, tag = 'output window, operand 0, single buffered']
    #allocation3 [shape = 's32[1]{0}', space=sflag, size = 0x4, scoped, tag = 'scoped memory for net_with_layernorm.1']
    %12 = vsyncpa [#allocation3], 0
    // Predicated region
    $region2: #{net_with_layernorm.1} parent=1 // pred_check
      _
    $region3: #{net_with_layernorm.1} parent=1 // pred_check_branch
      %14 = sbr.rel (0) target = $region5
    $region4: #{net_with_layernorm.1} parent=1 // pred_region
      _
    $region5: #{net_with_layernorm.1} parent=1 // pred_fallthru
      _
    // Predicated region
    $region6: #{net_with_layernorm.1} parent=1 // pred_check
      _
    $region7: #{net_with_layernorm.1} parent=1 // pred_check_branch
      %16 = sbr.rel (0) target = $region9
    $region8: #{net_with_layernorm.1} parent=1 // pred_region
      _
    $region9: #{net_with_layernorm.1} parent=1 // pred_fallthru
      _
    // Predicated region
    $region10: #{net_with_layernorm.1} parent=1 // pred_check
      _
    $region11: #{net_with_layernorm.1} parent=1 // pred_check_branch
      %18 = sbr.rel (0) target = $region13
    $region12: #{net_with_layernorm.1} parent=1 // pred_region
      _
    $region13: #{net_with_layernorm.1} parent=1 // pred_fallthru
      _
    // Predicated region
    $region14: #{net_with_layernorm.1} parent=1 // pred_check
      _
    $region15: #{net_with_layernorm.1} parent=1 // pred_check_branch
      %20 = sbr.rel (0) target = $region17
    $region16: #{net_with_layernorm.1} parent=1 // pred_region
      _
    $region17: #{net_with_layernorm.1} parent=1 // pred_fallthru
      _
    // Predicated region
    $region18: #{net_with_layernorm.1} parent=1 // pred_check
      _
    $region19: #{net_with_layernorm.1} parent=1 // pred_check_branch
      %22 = sbr.rel (0) target = $region21
    $region20: #{net_with_layernorm.1} parent=1 // pred_region
      _
    $region21: #{net_with_layernorm.1} parent=1 // pred_fallthru
      _
    // Predicated region
    $region22: #{net_with_layernorm.1} parent=1 // pred_check
      _
    $region23: #{net_with_layernorm.1} parent=1 // pred_check_branch
      %24 = sbr.rel (0) target = $region25
    $region24: #{net_with_layernorm.1} parent=1 // pred_region
      _
    $region25: #{net_with_layernorm.1} parent=1 // pred_fallthru
      _
    // Predicated region
    $region26: #{net_with_layernorm.1} parent=1 // pred_check
      _
    $region27: #{net_with_layernorm.1} parent=1 // pred_check_branch
      %26 = sbr.rel (0) target = $region29
    $region28: #{net_with_layernorm.1} parent=1 // pred_region
      _
    $region29: #{net_with_layernorm.1} parent=1 // pred_fallthru
      _
    %v28 = vld [vmem:[%s0] sm:$0xff]
    %v29 = vpack.c.bf16 %v28, %v28
    %v30 = vld [vmem:[%s1] sm:$0xf]
    %v31 = vld [vmem:[%s1 + $0x4] sm:$0xf]
    %v32 = vld [vmem:[%s1 + $0x8] sm:$0xf]
    %v33 = vld [vmem:[%s1 + $0xc] sm:$0xf]
    %v34 = vld [vmem:[%s1 + $0x10] sm:$0xf]
    %v35 = vld [vmem:[%s1 + $0x14] sm:$0xf]
    %v36 = vld [vmem:[%s1 + $0x18] sm:$0xf]
    %v37 = vld [vmem:[%s1 + $0x1c] sm:$0xf]
    %v38 = vld [vmem:[%s1 + $0x20] sm:$0xf]
    %v39 = vld [vmem:[%s1 + $0x24] sm:$0xf]
    %v40 = vld [vmem:[%s1 + $0x28] sm:$0xf]
    %v41 = vld [vmem:[%s1 + $0x2c] sm:$0xf]
    %v42 = vld [vmem:[%s1 + $0x30] sm:$0x3]
    %v43 = vld [vmem:[%s2] sm:$0x1]
    %v44 = vld [vmem:[%s3] sm:$0x1]
    %v45 = vld [vmem:[%s4] sm:$0x1]
    %v46 = vld [vmem:[%s5] sm:$0xf]
    %v47 = vld [vmem:[%s5 + $0x4] sm:$0xf]
    %v48 = vld [vmem:[%s5 + $0x8] sm:$0xf]
    %v49 = vld [vmem:[%s5 + $0xc] sm:$0xf]
    %v50 = vld [vmem:[%s5 + $0x10] sm:$0xf]
    %v51 = vld [vmem:[%s5 + $0x14] sm:$0xf]
    %v52 = vld [vmem:[%s5 + $0x18] sm:$0x1]
    %v53 = vld [vmem:[%s6] sm:$0x1]
    %v55 = vperm.slane %v43, 0
    %v70 = vunpack.c.l.b16 %v30
    %v71 = vunpack.c.l.b16 %v31
    %v72 = vunpack.c.l.b16 %v32
    %v73 = vunpack.c.l.b16 %v33
    %v74 = vunpack.c.l.b16 %v34
    %v75 = vunpack.c.l.b16 %v35
    %v76 = vunpack.c.l.b16 %v36
    %v77 = vunpack.c.l.b16 %v37
    %v78 = vunpack.c.l.b16 %v38
    %v79 = vunpack.c.l.b16 %v39
    %v80 = vunpack.c.l.b16 %v40
    %v81 = vunpack.c.l.b16 %v41
    %v82 = vunpack.c.l.b16 %v42
    %v83 = vpack.c.b16 %v71, %v70
    %v84 = vpack.c.b16 %v73, %v72
    %v85 = vpack.c.b16 %v75, %v74
    %v86 = vpack.c.b16 %v77, %v76
    %v87 = vpack.c.b16 %v79, %v78
    %v88 = vpack.c.b16 %v81, %v80
    %v89 = vpack.c.b16 %v82, %v82
    %vm96 = vcmask 818176
    %v98 = vsel %vm96, %v29, 0
    %vm100 = vcmask 1041408
    %v102 = vsel %vm100, %v89, 0
    %104 = vmatpush.bf16.msra.mxu0 0
    %105 = vmatpush.bf16.msra.mxu0 %v102
    %106 = vmatpush.bf16.msra.mxu0 %v88
    %107 = vmatpush.bf16.msra.mxu0 %v87
    %108 = vmatpush.bf16.msra.mxu0 %v86
    %109 = vmatpush.bf16.msra.mxu0 %v85
    %110 = vmatpush.bf16.msra.mxu0 %v84
    %111 = vmatpush.bf16.msra.mxu0 %v83
    %112 = vmatmul.bf16.gmra.mxu0 %v98
    %v113 = vpop.f32.mrf.mxu0
    %v114 = vadd.f32 %v55, %v113
    %v115 = vpop.f32.mrf.mxu0
    %116 = vdwg.mxu0
    %vm117 = vcmask 408576
    %v118 = vsel %vm117, %v114, 0.0
    %119 = vadd.xlane.f32.xlu0 %v118
    %v120 = vpop.xlane.xlu0 %119
    %v121 = vrcp.pop 50.0
    %v122 = vmul.f32 50.0, %v121
    %v123 = vsub.f32 1.0, %v122
    %v124 = vmul.f32 %v121, %v123
    %v125 = vadd.f32 %v121, %v124
    %vm126 = vweird.f32 %v121
    %v127 = vsel %vm126, %v121, %v125
    %v128 = vmul.f32 %v120, %v127
    %v129 = vsub.f32 %v114, %v128
    %v130 = vmul.f32 %v129, %v129
    %v131 = vsel %vm117, %v130, 0.0
    %132 = vadd.xlane.f32.xlu0 %v131
    %v133 = vpop.xlane.xlu0 %132
    %v134 = vmul.f32 %v133, %v127
    %v135 = vadd.f32 %v134, 1e-05
    %v136 = vrsqrt.pop %v135
    %v137 = vmul.f32 %v136, %v135
    %v138 = vmul.f32 %v137, %v136
    %v139 = vmul.f32 0.5, %v138
    %v140 = vsub.f32 1.5, %v139
    %v141 = vmul.f32 %v136, %v140
    %vm142 = vweird.f32 %v135
    %vm143 = vweird.f32 %v136
    %vm144 = vmor %vm142, %vm143
    %v145 = vsel %vm144, %v136, %v141
    %v146 = vmul.f32 %v129, %v145
    %v148 = vperm.slane %v44, 0
    %v150 = vmul.f32 %v146, %v148
    %v152 = vperm.slane %v45, 0
    %v154 = vadd.f32 %v150, %v152
    %v155 = vmax.f32 %v154, 0.0
    %v156 = vpack.c.bf16 %v155, %v155
    %v158 = vperm.slane %v53, 0
    %v167 = vunpack.c.l.b16 %v46
    %v168 = vunpack.c.l.b16 %v47
    %v169 = vunpack.c.l.b16 %v48
    %v170 = vunpack.c.l.b16 %v49
    %v171 = vunpack.c.l.b16 %v50
    %v172 = vunpack.c.l.b16 %v51
    %v173 = vunpack.c.l.b16 %v52
    %v174 = vpack.c.b16 %v168, %v167
    %v175 = vpack.c.b16 %v170, %v169
    %v176 = vpack.c.b16 %v172, %v171
    %v177 = vpack.c.b16 %v173, %v173
    %v182 = vsel %vm117, %v156, 0
    %vm184 = vcmask 1040384
    %v186 = vsel %vm184, %v177, 0
    %188 = vmatpush.bf16.msra.mxu0 0
    %189 = vmatpush.bf16.msra.mxu0 0
    %190 = vmatpush.bf16.msra.mxu0 0
    %191 = vmatpush.bf16.msra.mxu0 0
    %192 = vmatpush.bf16.msra.mxu0 %v186
    %193 = vmatpush.bf16.msra.mxu0 %v176
    %194 = vmatpush.bf16.msra.mxu0 %v175
    %195 = vmatpush.bf16.msra.mxu0 %v174
    %196 = vmatmul.bf16.gmra.mxu0 %v182
    %v197 = vpop.f32.mrf.mxu0
    %v198 = vadd.f32 %v158, %v197
    %v199 = vpop.f32.mrf.mxu0
    %200 = vdwg.mxu0
    %vm201 = vcmask 80896
    %202 = vst.msk [vmem:[#allocation2] sm:$0xff] %vm201, %v198
    // Predicated region
    $region30: #{net_with_layernorm.1} parent=1 // pred_check
      _
    $region31: #{net_with_layernorm.1} parent=1 // pred_check_branch
      %204 = sbr.rel (0) target = $region33
    $region32: #{net_with_layernorm.1} parent=1 // pred_region
      %206 = vsyncadd [#allocation3], 0
      %s208 = sshll.u32 [#allocation2], 4
      %s209 = int_to_ptr.vmem [resolvable:$true] %s208
      %s210 = sshll.u32 %s7, 4
      %s211 = int_to_ptr.hbm [resolvable:$true] %s210
      %213 = dma.vmem_to_hbm [thread:$0]  %s209, 128, %s211, [#allocation3]
    $region33: #{net_with_layernorm.1} parent=1 // pred_fallthru
      _
    // Predicated region
    $region34: #{net_with_layernorm.1} parent=1 // pred_check
      _
    $region35: #{net_with_layernorm.1} parent=1 // pred_check_branch
      %215 = sbr.rel (0) target = $region37
    $region36: #{net_with_layernorm.1} parent=1 // pred_region
      %217 = dma.done [#allocation3], 128
    $region37: #{net_with_layernorm.1} parent=1 // pred_fallthru
      _
    %218 = vsyncpa [#allocation3], 1

</llo_original>
